<compile_context>
chip_gen: v6e
topology: v6e:2x2x1
jax: 0.10.0
libtpu: 0.0.40
codegen_flags: <defaults>
</compile_context>

<pallas_src>
import functools
import math

import jax
import jax.numpy as jnp
import numpy as np
from jax import lax
from jax.experimental import pallas as pl
from jax.experimental.pallas import tpu as pltpu

BN_EPS = 1e-5


def _round_up(x, m):
    return (x + m - 1) // m * m


def _vmem_limit(nbytes):
    """Explicit scoped-VMEM limit: generous but safe on v5e/v6e/v7x."""
    return int(max(16 * 2**20, min(48 * 2**20, int(1.5 * nbytes) + (4 << 20))))


def _pick_tt(T, N, D, Hp, out_bytes, max_tt=32, vmem_budget=24 * 2**20):
    """Timesteps per grid step.

    Keeps TT*N a multiple of 16 (bf16 sublane packing), fits a VMEM budget
    (v7x-safe), prefers exact divisors of T, and otherwise pads T (masked
    steps) instead of degrading to TT=1.
    """
    base = 16 // math.gcd(N, 16)
    G = 4 * Hp

    def footprint(tt):
        R = tt * N
        return (2 * R * D * 2 + 2 * R * Hp * out_bytes + R * G * 4
                + 2 * (D * G * 2 + G * 4 + Hp * G * 2) + 10 * N * Hp * 4)

    cands = list(range(max(max_tt // base, 1) * base, 0, -base))
    feasible = [tt for tt in cands if footprint(tt) <= vmem_budget] or [base]
    exact = [tt for tt in feasible if T % tt == 0]
    if exact:
        return exact[0]                      # largest exact divisor (descending)
    # pad T: minimize padded length, then prefer larger TT
    return min(feasible, key=lambda tt: (-(-T // tt) * tt, -tt))


def _pick_stats_tile(rows_p, R, max_rows=2048):
    """Row tile for the stats kernel: a multiple of R that divides rows_p."""
    n_blk = rows_p // R
    k = 1
    for kk in range(min(n_blk, max(1, max_rows // R)), 0, -1):
        if n_blk % kk == 0:
            k = kk
            break
    return R * k


def _pick_dblk(D):
    """Feature-block width for the stats kernel (parallel axis on v7x)."""
    if D % 128 == 0 and D > 128:
        for db in (512, 256, 128):
            if D % db == 0:
                return db
    return D


# ---------------- BatchNorm batch statistics + fused bf16 cast ---------------
def _bn_stats_cast_kernel(x_ref, shift_ref, stat_ref, xbf_ref):
    @pl.when(pl.program_id(1) == 0)
    def _():
        stat_ref[...] = jnp.zeros_like(stat_ref)

    x = x_ref[...]                                    # (tile, dblk) f32
    xbf_ref[...] = x.astype(jnp.bfloat16)             # fused bf16 cast of x
    u = x - shift_ref[...]                            # shifted sums (stable var)
    s = jnp.sum(u, axis=0, keepdims=True)
    q = jnp.sum(u * u, axis=0, keepdims=True)
    stat_ref[...] += jnp.concatenate([s, q], axis=0)  # (2, dblk)


def bn_stats_and_cast(x2_padded, shift, row_tile):
    """Shifted per-feature (sum, sumsq) over rows + bf16 copy of x, one pass."""
    rows_p, D = x2_padded.shape
    dblk = _pick_dblk(D)
    est = (2 * row_tile * dblk * 4 + 2 * row_tile * dblk * 2
           + 2 * 2 * dblk * 4 + 2 * dblk * 4)
    stats, x_bf = pl.pallas_call(
        _bn_stats_cast_kernel,
        out_shape=(jax.ShapeDtypeStruct((2, D), jnp.float32),
                   jax.ShapeDtypeStruct((rows_p, D), jnp.bfloat16)),
        grid=(D // dblk, rows_p // row_tile),
        in_specs=[pl.BlockSpec((row_tile, dblk), lambda d, r: (r, d)),
                  pl.BlockSpec((1, dblk), lambda d, r: (0, d))],
        out_specs=[pl.BlockSpec((2, dblk), lambda d, r: (0, d)),
                   pl.BlockSpec((row_tile, dblk), lambda d, r: (r, d))],
        compiler_params=pltpu.CompilerParams(
            dimension_semantics=("parallel", "arbitrary"),
            vmem_limit_bytes=_vmem_limit(est)),
    )(x2_padded, shift.reshape(1, D))
    return stats, x_bf


# --------------------- Fused projection + LSTM recurrence --------------------
def _sigmoid(x):
    # one EUP tanh instead of exp + reciprocal
    return 0.5 * jnp.tanh(0.5 * x) + 0.5


def _fused_lstm_kernel(x_ref, weff_ref, bias_ref, whh_ref, h0_ref, c0_ref,
                       out_ref, hT_ref, cT_ref, gx_s, h_s, c_s,
                       *, N, Hp, TT, T_real, t_padded, unroll):
    blk = pl.program_id(0)

    @pl.when(blk == 0)
    def _():
        h_s[...] = h0_ref[...]
        c_s[...] = c0_ref[...]

    # Fused input projection for this block of TT timesteps: a single
    # lane-dense (TT*N, D) @ (D, 4Hp) bf16 MXU GEMM.  Gates never touch HBM.
    gx_s[...] = (jnp.dot(x_ref[...], weff_ref[...],
                         preferred_element_type=jnp.float32) + bias_ref[...])

    if t_padded:
        t0 = blk * TT

    def step(tt, carry):
        h, c = carry
        r0 = pl.multiple_of(tt * N, N)
        gates = gx_s[pl.ds(r0, N), :] + jnp.dot(
            h.astype(jnp.bfloat16), whh_ref[...],
            preferred_element_type=jnp.float32)           # (N, 4Hp), f32 acc
        # PyTorch LSTM gate order i, f, g, o; slices are 128-lane aligned.
        i_g = _sigmoid(gates[:, 0 * Hp:1 * Hp])
        f_g = _sigmoid(gates[:, 1 * Hp:2 * Hp])
        g_g = jnp.tanh(gates[:, 2 * Hp:3 * Hp])
        o_g = _sigmoid(gates[:, 3 * Hp:4 * Hp])
        c_new = f_g * c + i_g * g_g
        h_new = o_g * jnp.tanh(c_new)
        if t_padded:                      # only traced when T was padded
            valid = (t0 + tt) < T_real
            c_new = jnp.where(valid, c_new, c)
            h_new = jnp.where(valid, h_new, h)
        out_ref[pl.ds(r0, N), :] = h_new.astype(out_ref.dtype)
        return h_new, c_new

    h_fin, c_fin = lax.fori_loop(0, TT, step, (h_s[...], c_s[...]),
                                 unroll=unroll)
    h_s[...] = h_fin
    c_s[...] = c_fin

    @pl.when(blk == pl.num_programs(0) - 1)
    def _():
        hT_ref[...] = h_fin
        cT_ref[...] = c_fin


def lstm_fused(x_bf_flat, w_eff, bias_eff, whh, h0, c0, *,
               N, Hp, TT, T_real, T_pad, out_dtype):
    rows_p, D = x_bf_flat.shape
    R = TT * N
    G = 4 * Hp
    n_blk = T_pad // TT

    # cap unroll when per-step live state gets large (vreg pressure)
    step_bytes = N * G * 4
    unroll = TT if step_bytes <= 64 * 1024 else (4 if step_bytes <= 256 * 1024 else 2)
    unroll = max(1, min(unroll, TT))

    out_bytes = jnp.dtype(out_dtype).itemsize
    est = (2 * R * D * 2 + 2 * R * Hp * out_bytes + R * G * 4
           + 2 * (D * G * 2 + G * 4 + Hp * G * 2) + 10 * N * Hp * 4)

    kernel = functools.partial(
        _fused_lstm_kernel, N=N, Hp=Hp, TT=TT, T_real=T_real,
        t_padded=(T_pad != T_real), unroll=unroll)

    grid_spec = pltpu.PrefetchScalarGridSpec(
        num_scalar_prefetch=0,
        grid=(n_blk,),
        in_specs=[
            pl.BlockSpec((R, D), lambda b: (b, 0)),    # bf16 x rows (pipelined)
            pl.BlockSpec((D, G), lambda b: (0, 0)),    # W_eff (BN-folded, resident)
            pl.BlockSpec((1, G), lambda b: (0, 0)),    # folded bias (resident)
            pl.BlockSpec((Hp, G), lambda b: (0, 0)),   # W_hh^T fused (resident)
            pl.BlockSpec((N, Hp), lambda b: (0, 0)),   # h0
            pl.BlockSpec((N, Hp), lambda b: (0, 0)),   # c0
        ],
        out_specs=[
            pl.BlockSpec((R, Hp), lambda b: (b, 0)),   # hidden outputs (lane-dense)
            pl.BlockSpec((N, Hp), lambda b: (0, 0)),   # final h
            pl.BlockSpec((N, Hp), lambda b: (0, 0)),   # final c
        ],
        scratch_shapes=[
            pltpu.VMEM((R, G), jnp.float32),           # per-block gates (VMEM only)
            pltpu.VMEM((N, Hp), jnp.float32),          # h carry
            pltpu.VMEM((N, Hp), jnp.float32),          # c carry
        ],
    )
    out, hT, cT = pl.pallas_call(
        kernel,
        out_shape=(jax.ShapeDtypeStruct((rows_p, Hp), out_dtype),
                   jax.ShapeDtypeStruct((N, Hp), jnp.float32),
                   jax.ShapeDtypeStruct((N, Hp), jnp.float32)),
        grid_spec=grid_spec,
        compiler_params=pltpu.CompilerParams(
            dimension_semantics=("arbitrary",),        # recurrence is sequential
            vmem_limit_bytes=_vmem_limit(est)),
    )(x_bf_flat, w_eff, bias_eff, whh, h0, c0)
    return out, (hT, cT)


# ------------------------------ Module wrapper --------------------------------
def _pad_gatewise_cols(w, H, Hp):
    """(rows, 4H) -> (rows, 4Hp): each gate's H columns zero-padded to Hp."""
    w = jnp.asarray(w)
    if Hp == H:
        return w
    parts = [jnp.pad(w[:, k * H:(k + 1) * H], ((0, 0), (0, Hp - H))) for k in range(4)]
    return jnp.concatenate(parts, axis=1)


class BatchRNNStreamPallas:
    """Mirrors danspeech BatchRNNStream: SequenceWise(BatchNorm1d) + streaming LSTM."""

    def __init__(self, input_size, hidden_size, key, batch_norm=True):
        self.input_size = input_size
        self.hidden_size = hidden_size
        self.use_bn = batch_norm
        H, D = hidden_size, input_size
        self.Hp = _round_up(H, 128)        # lane-aligned hidden size (v5e MXU tile 128)
        Hp = self.Hp
        k = 1.0 / np.sqrt(H)
        k1, k2, k3, k4 = jax.random.split(key, 4)
        self.w_ih = jax.random.uniform(k1, (4 * H, D), jnp.float32, -k, k)
        self.w_hh = jax.random.uniform(k2, (4 * H, H), jnp.float32, -k, k)
        self.b_ih = jax.random.uniform(k3, (4 * H,), jnp.float32, -k, k)
        self.b_hh = jax.random.uniform(k4, (4 * H,), jnp.float32, -k, k)
        # BatchNorm1d default init
        self.gamma = jnp.ones((D,), jnp.float32)
        self.beta = jnp.zeros((D,), jnp.float32)

        # Pre-transposed, gate-wise lane-padded weights.  Padded lanes are
        # exact zeros, so padded h/c stay 0 and the streaming state is safe.
        self.wih4_p = _pad_gatewise_cols(self.w_ih.T, H, Hp)               # (D, 4Hp) f32
        whh_p = _pad_gatewise_cols(self.w_hh.T, H, Hp)                     # (H, 4Hp)
        whh_p = jnp.pad(whh_p, ((0, Hp - H), (0, 0)))                      # (Hp, 4Hp)
        self.whh4_bf16 = whh_p.astype(jnp.bfloat16)                        # MXU-native, resident
        self.b4_p = _pad_gatewise_cols((self.b_ih + self.b_hh).reshape(1, -1),
                                       H, Hp).reshape(-1)                  # (4Hp,) f32

        self.previous_hidden = None
        self.previous_init = False

    def forward(self, x, is_last):
        T, N, D = x.shape
        H, Hp = self.hidden_size, self.Hp
        out_bytes = jnp.dtype(x.dtype).itemsize
        TT = _pick_tt(T, N, D, Hp, out_bytes)
        T_pad = _round_up(T, TT)
        rows, rows_p = T * N, T_pad * N

        x2 = x.reshape(rows, D)
        if rows_p != rows:
            x2 = jnp.pad(x2, ((0, rows_p - rows), (0, 0)))

        if self.use_bn:
            # Per-feature shift (~mean) for numerically stable shifted sums.
            shift = jnp.mean(x[0].astype(jnp.float32), axis=0)              # (D,)
            stats, x_bf = bn_stats_and_cast(x2, shift,
                                            _pick_stats_tile(rows_p, TT * N))
            sum_s, sumsq_s = stats[0], stats[1]
            pad_rows = rows_p - rows
            if pad_rows:   # padded rows are zero: remove their shifted contribution
                sum_s = sum_s + pad_rows * shift
                sumsq_s = sumsq_s - pad_rows * shift * shift
            mean = shift + sum_s / rows
            var = jnp.maximum(sumsq_s / rows - (sum_s / rows) ** 2, 0.0)    # biased var
            s = self.gamma * lax.rsqrt(var + BN_EPS)
            # Fold BN into the input projection:
            #   ((x - mean)*s + beta) @ W_ih^T == x @ (diag(s) W_ih^T) + (beta - mean*s) @ W_ih^T
            w_eff = (s[:, None] * self.wih4_p).astype(jnp.bfloat16)         # (D, 4Hp)
            bias_eff = self.b4_p + (self.beta - mean * s) @ self.wih4_p     # (4Hp,) f32
        else:
            x_bf = x2.astype(jnp.bfloat16)
            w_eff = self.wih4_p.astype(jnp.bfloat16)
            bias_eff = self.b4_p

        if not self.previous_init:
            h0 = jnp.zeros((N, Hp), jnp.float32)
            c0 = jnp.zeros((N, Hp), jnp.float32)
        else:
            h0, c0 = self.previous_hidden

        out_p, (hT, cT) = lstm_fused(
            x_bf, w_eff, bias_eff.reshape(1, -1).astype(jnp.float32),
            self.whh4_bf16, h0, c0,
            N=N, Hp=Hp, TT=TT, T_real=T, T_pad=T_pad, out_dtype=x.dtype)

        self.previous_hidden = (hT, cT)
        self.previous_init = True
        if is_last:
            self.previous_hidden = None
            self.previous_init = False

        out = out_p.reshape(T_pad, N, Hp)
        if T_pad != T or Hp != H:
            out = out[:T, :, :H]
        return out


# ------------------------------ pure-JAX reference ---------------------------
def _ref_bn(x, gamma, beta):
    T, N, D = x.shape
    x2 = x.reshape(T * N, D)
    m = x2.mean(axis=0)
    v = ((x2 - m) ** 2).mean(axis=0)
    y = (x2 - m) / jnp.sqrt(v + BN_EPS) * gamma + beta
    return y.reshape(T, N, D)


def _ref_lstm(x, w_ih, w_hh, b_ih, b_hh, h0, c0):
    def step(carry, xt):
        h, c = carry
        gates = xt @ w_ih.T + b_ih + h @ w_hh.T + b_hh
        i, f, g, o = jnp.split(gates, 4, axis=-1)
        c = jax.nn.sigmoid(f) * c + jax.nn.sigmoid(i) * jnp.tanh(g)
        h = jax.nn.sigmoid(o) * jnp.tanh(c)
        return (h, c), h
    (hT, cT), ys = jax.lax.scan(step, (h0, c0), x)
    return ys, (hT, cT)


if __name__ == "__main__":
    T, N, D, H = 8, 2, 32, 32
    key = jax.random.PRNGKey(0)
    k_params, k_x1, k_x2 = jax.random.split(key, 3)

    model = BatchRNNStreamPallas(D, H, k_params, batch_norm=True)
    x1 = jax.random.normal(k_x1, (T, N, D), jnp.float32)
    x2 = jax.random.normal(k_x2, (T, N, D), jnp.float32)

    # Streaming: first chunk (state initialized to zero), second chunk reuses state.
    y1 = model.forward(x1, is_last=False)
    y2 = model.forward(x2, is_last=True)
    jax.block_until_ready((y1, y2))

    # Reference (f32)
    h0 = jnp.zeros((N, H), jnp.float32)
    c0 = jnp.zeros((N, H), jnp.float32)
    r1, (h1, c1) = _ref_lstm(_ref_bn(x1, model.gamma, model.beta),
                             model.w_ih, model.w_hh, model.b_ih, model.b_hh, h0, c0)
    r2, _ = _ref_lstm(_ref_bn(x2, model.gamma, model.beta),
                      model.w_ih, model.w_hh, model.b_ih, model.b_hh, h1, c1)

    np.testing.assert_allclose(np.asarray(y1), np.asarray(r1), atol=2e-2, rtol=2e-2)
    np.testing.assert_allclose(np.asarray(y2), np.asarray(r2), atol=2e-2, rtol=2e-2)
    print("KERNEL_OK")
</pallas_src>

<mosaic_0001>
module attributes {stable_mosaic.version = 11 : i64} {
  func.func @_bn_stats_cast_kernel(%arg0: i32, %arg1: i32, %arg2: memref<16x32xf32, #tpu.memory_space<vmem>>, %arg3: memref<1x32xf32, #tpu.memory_space<vmem>>, %arg4: memref<2x32xf32, #tpu.memory_space<vmem>>, %arg5: memref<16x32xbf16, #tpu.memory_space<vmem>>) attributes {dimension_semantics = [#tpu.dimension_semantics<parallel>, #tpu.dimension_semantics<arbitrary>], iteration_bounds = array<i64: 1, 1>, scalar_prefetch = 0 : i64, scratch_operands = 0 : i64, tpu.core_type = #tpu.core_type<tc>, window_params = [{transform_indices = @transform_0, window_bounds = array<i64: 16, 32>}, {transform_indices = @transform_1, window_bounds = array<i64: 1, 32>}, {transform_indices = @transform_2, window_bounds = array<i64: 2, 32>}, {transform_indices = @transform_3, window_bounds = array<i64: 16, 32>}]} {
    %c0_i32 = arith.constant 0 : i32
    %0 = arith.cmpi eq, %arg1, %c0_i32 : i32
    %1 = arith.extui %0 : i1 to i32
    %c0_i32_0 = arith.constant 0 : i32
    %2 = arith.cmpi ne, %1, %c0_i32_0 : i32
    scf.if %2 {
      %cst_11 = arith.constant 0.000000e+00 : f32
      %18 = vector.broadcast %cst_11 : f32 to vector<2x32xf32>
      %c0_12 = arith.constant 0 : index
      %c0_13 = arith.constant 0 : index
      %19 = vector.load %arg4[%c0_12, %c0_13] : memref<2x32xf32, #tpu.memory_space<vmem>>, vector<2x32xf32>
      tpu.vector_store %arg4[%c0_12, %c0_13], %18 {strides = array<i32>} : memref<2x32xf32, #tpu.memory_space<vmem>>, vector<2x32xf32>,
    } else {
    }
    %c0 = arith.constant 0 : index
    %c0_1 = arith.constant 0 : index
    %3 = vector.load %arg2[%c0, %c0_1] : memref<16x32xf32, #tpu.memory_space<vmem>>, vector<16x32xf32>
    %4 = arith.truncf %3 : vector<16x32xf32> to vector<16x32xbf16>
    %c0_2 = arith.constant 0 : index
    %c0_3 = arith.constant 0 : index
    %5 = vector.load %arg5[%c0_2, %c0_3] : memref<16x32xbf16, #tpu.memory_space<vmem>>, vector<16x32xbf16>
    tpu.vector_store %arg5[%c0_2, %c0_3], %4 {strides = array<i32>} : memref<16x32xbf16, #tpu.memory_space<vmem>>, vector<16x32xbf16>,
    %c0_4 = arith.constant 0 : index
    %c0_5 = arith.constant 0 : index
    %6 = vector.load %arg3[%c0_4, %c0_5] : memref<1x32xf32, #tpu.memory_space<vmem>>, vector<1x32xf32>
    %7 = vector.broadcast %6 : vector<1x32xf32> to vector<16x32xf32>
    %8 = arith.subf %3, %7 : vector<16x32xf32>
    %cst = arith.constant dense<0.000000e+00> : vector<32xf32>
    %9 = vector.multi_reduction <add>, %8, %cst [0] : vector<16x32xf32> to vector<32xf32>
    %10 = vector.shape_cast %9 : vector<32xf32> to vector<1x32xf32>
    %11 = arith.mulf %8, %8 : vector<16x32xf32>
    %cst_6 = arith.constant dense<0.000000e+00> : vector<32xf32>
    %12 = vector.multi_reduction <add>, %11, %cst_6 [0] : vector<16x32xf32> to vector<32xf32>
    %13 = vector.shape_cast %12 : vector<32xf32> to vector<1x32xf32>
    %c0_7 = arith.constant 0 : index
    %c0_8 = arith.constant 0 : index
    %14 = vector.load %arg4[%c0_7, %c0_8] : memref<2x32xf32, #tpu.memory_space<vmem>>, vector<2x32xf32>
    %15 = tpu.concatenate %10, %13 in 0 : vector<1x32xf32>, vector<1x32xf32> -> vector<2x32xf32>
    %16 = arith.addf %14, %15 : vector<2x32xf32>
    %c0_9 = arith.constant 0 : index
    %c0_10 = arith.constant 0 : index
    %17 = vector.load %arg4[%c0_9, %c0_10] : memref<2x32xf32, #tpu.memory_space<vmem>>, vector<2x32xf32>
    tpu.vector_store %arg4[%c0_9, %c0_10], %16 {strides = array<i32>} : memref<2x32xf32, #tpu.memory_space<vmem>>, vector<2x32xf32>,
    return
  }
  func.func @transform_0(%arg0: i32, %arg1: i32) -> (i32, i32) {
    %c0_i32 = arith.constant 0 : i32
    return %arg1, %arg0 : i32, i32
  }
  func.func @transform_1(%arg0: i32, %arg1: i32) -> (i32, i32) {
    %c0_i32 = arith.constant 0 : i32
    %c0_i32_0 = arith.constant 0 : i32
    return %c0_i32, %arg0 : i32, i32
  }
  func.func @transform_2(%arg0: i32, %arg1: i32) -> (i32, i32) {
    %c0_i32 = arith.constant 0 : i32
    %c0_i32_0 = arith.constant 0 : i32
    return %c0_i32, %arg0 : i32, i32
  }
  func.func @transform_3(%arg0: i32, %arg1: i32) -> (i32, i32) {
    %c0_i32 = arith.constant 0 : i32
    return %arg1, %arg0 : i32, i32
  }
}

</mosaic_0001>

<llo_original>
// kernel: tpu_custom_call.1
$region0: #{tpu_custom_call.1}
  #allocation0 [shape = 'u32[]', space=smem, size = 0x4, offset = 0x4, fixed_abs, tag = 'smem constant byte address 0x4 - core index']
  #allocation1 [shape = 'u32[144,128]{1,0:T(1,128)}', space=vmem, size = 0x12000, scoped, tag = 'internal scratch']
  %s0 = inlined_call_operand.hbm [shape: f32[16,32], index: 0, kind: input, shape index: {}]
  %s1 = inlined_call_operand.vmem [shape: f32[1,32], index: 1, kind: input, shape index: {}]
  %s2 = inlined_call_operand.hbm [shape: f32[2,32], index: 2, kind: output, shape index: {0}]
  %s3 = inlined_call_operand.hbm [shape: bf16[16,32], index: 3, kind: output, shape index: {1}]
  %4 = xla_tuple %s2, %s3
  %s5 = sld [smem:[#allocation0]]
  $region34: #{tpu_custom_call.1} parent=0
    _
  %s7 = ssub.s32 1, %s5
  %s8 = scalar_select 0, %s7, %s5
  $region1: #{tpu_custom_call.1} parent=0
    #allocation2 [shape = 'u8[8192]{0}', space=vmem, size = 0x2000, scoped, tag = 'input window, operand 0, single buffered']
    #allocation3 [shape = 's32[1]{0}', space=sflag, size = 0x4, scoped, tag = 'scoped memory for tpu_custom_call.1']
    #allocation4 [shape = 's32[1]{0}', space=sflag, size = 0x4, scoped, tag = 'scoped memory for tpu_custom_call.1']
    #allocation5 [shape = 'u8[1024]{0}', space=vmem, size = 0x400, scoped, tag = 'output window, operand 0, single buffered']
    #allocation6 [shape = 'u8[4096]{0}', space=vmem, size = 0x1000, scoped, tag = 'output window, operand 1, single buffered']
    #allocation7 [shape = 's32[1]{0}', space=sflag, size = 0x4, scoped, tag = 'scoped memory for tpu_custom_call.1']
    %9 = vsyncpa [#allocation3], 0
    %10 = vsyncpa [#allocation4], 0
    %11 = vsyncpa [#allocation7], 0
    // Predicated region
    $region2: #{tpu_custom_call.1} parent=1 // pred_check
      _
    $region3: #{tpu_custom_call.1} parent=1 // pred_check_branch
      %13 = sbr.rel (0) target = $region5
    $region4: #{tpu_custom_call.1} parent=1 // pred_region
      %s15 = ssub.s32 256, 256
      %16 = vsyncadd [#allocation3], %s15
      %s17 = sshll.u32 [#allocation2], 4
      %s18 = int_to_ptr.vmem [resolvable:$true] %s17
      %23 = dma.hbm_to_vmem [thread:$0]  %s0, 256, %s18, [#allocation3], 128, 128, 8
    $region5: #{tpu_custom_call.1} parent=1 // pred_fallthru
      _
    // Predicated region
    $region6: #{tpu_custom_call.1} parent=1 // pred_check
      _
    $region7: #{tpu_custom_call.1} parent=1 // pred_check_branch
      %25 = sbr.rel (0) target = $region9
    $region8: #{tpu_custom_call.1} parent=1 // pred_region
      _
    $region9: #{tpu_custom_call.1} parent=1 // pred_fallthru
      _
    // Predicated region
    $region10: #{tpu_custom_call.1} parent=1 // pred_check
      _
    $region11: #{tpu_custom_call.1} parent=1 // pred_check_branch
      %27 = sbr.rel (0) target = $region13
    $region12: #{tpu_custom_call.1} parent=1 // pred_region
      %28 = dma.done [#allocation3], 256
    $region13: #{tpu_custom_call.1} parent=1 // pred_fallthru
      _
    %p29 = scmp.eq.s32.totalorder 0, 0
    // Predicated region
    $region14: #{tpu_custom_call.1} parent=1 // pred_check
      %p30 = pneg %p29
    $region15: #{tpu_custom_call.1} parent=1 // pred_check_branch
      %32 = sbr.rel (%p30) target = $region17
    $region16: #{tpu_custom_call.1} parent=1 // pred_region
      %vm33 = vcmask 254976
      %34 = vst.msk [vmem:[#allocation5] sm:$0x3] %vm33, 0.0
    $region17: #{tpu_custom_call.1} parent=1 // pred_fallthru
      _
    %v35 = vld [vmem:[#allocation2] sm:$0xff]
    %v36 = vld [vmem:[#allocation2 + $0x8] sm:$0xff]
    %v37 = vpack.c.bf16 %v36, %v35
    %v39 = vunpack.c.l.b16 %v37
    %v40 = vunpack.c.h.b16 %v37
    %v41 = vpack.c.b16 %v39, %v39
    %v42 = vpack.c.b16 %v40, %v40
    %vm45 = vcmask 257024
    %46 = vst.msk [vmem:[#allocation6] sm:$0xf] %vm45, %v41
    %47 = vst.msk [vmem:[#allocation6 + $0x4] sm:$0xf] %vm45, %v42
    %v48 = vld [vmem:[%s1] sm:$0x1]
    %v50 = vlaneseq
    %v51 = vshrl.u32 %v50, 7
    %v52 = vsub.s32 0, %v51
    %v53 = vrot.slane %v48, %v52
    %v55 = vsub.f32 %v35, %v53
    %v56 = vsub.f32 %v36, %v53
    %vm57 = vcmask 261120
    %v58 = vsel %vm57, %v55, 0.0
    %v59 = vsel %vm57, %v56, 0.0
    %v60 = vadd.f32 %v58, %v59
    %v61 = vrot.slane %v60, 4
    %v62 = vadd.f32 %v60, %v61
    %v63 = vrot.slane %v62, 2
    %v64 = vadd.f32 %v62, %v63
    %v65 = vrot.slane %v64, 1
    %v66 = vadd.f32 %v64, %v65
    %v67 = vmul.f32 %v55, %v55
    %v68 = vmul.f32 %v56, %v56
    %v69 = vsel %vm57, %v67, 0.0
    %v70 = vsel %vm57, %v68, 0.0
    %v71 = vadd.f32 %v69, %v70
    %v72 = vrot.slane %v71, 4
    %v73 = vadd.f32 %v71, %v72
    %v74 = vrot.slane %v73, 2
    %v75 = vadd.f32 %v73, %v74
    %v76 = vrot.slane %v75, 1
    %v77 = vadd.f32 %v75, %v76
    %v78 = vld [vmem:[#allocation5] sm:$0x3]
    %vm79 = vcmask 1040384
    %v80 = vsel %vm79, %v66, %v77
    %v81 = vadd.f32 %v78, %v80
    %vm82 = vcmask 254976
    %83 = vst.msk [vmem:[#allocation5] sm:$0x3] %vm82, %v81
    // Predicated region
    $region18: #{tpu_custom_call.1} parent=1 // pred_check
      _
    $region19: #{tpu_custom_call.1} parent=1 // pred_check_branch
      %85 = sbr.rel (0) target = $region21
    $region20: #{tpu_custom_call.1} parent=1 // pred_region
      %s87 = ssub.s32 32, 32
      %88 = vsyncadd [#allocation4], %s87
      %s90 = sshll.u32 [#allocation5], 4
      %s91 = int_to_ptr.vmem [resolvable:$true] %s90
      %93 = dma.vmem_to_hbm [thread:$0]  %s91, 32, %s2, [#allocation4]
    $region21: #{tpu_custom_call.1} parent=1 // pred_fallthru
      _
    // Predicated region
    $region22: #{tpu_custom_call.1} parent=1 // pred_check
      _
    $region23: #{tpu_custom_call.1} parent=1 // pred_check_branch
      %95 = sbr.rel (0) target = $region25
    $region24: #{tpu_custom_call.1} parent=1 // pred_region
      %s97 = ssub.s32 128, 128
      %98 = vsyncadd [#allocation7], %s97
      %s99 = sshll.u32 [#allocation6], 4
      %s100 = int_to_ptr.vmem [resolvable:$true] %s99
      %105 = dma.vmem_to_hbm [thread:$0]  %s100, 128, %s3, [#allocation7], 64, 64, 4
    $region25: #{tpu_custom_call.1} parent=1 // pred_fallthru
      _
    // Predicated region
    $region26: #{tpu_custom_call.1} parent=1 // pred_check
      _
    $region27: #{tpu_custom_call.1} parent=1 // pred_check_branch
      %107 = sbr.rel (0) target = $region29
    $region28: #{tpu_custom_call.1} parent=1 // pred_region
      %108 = dma.done [#allocation4], 32
    $region29: #{tpu_custom_call.1} parent=1 // pred_fallthru
      _
    // Predicated region
    $region30: #{tpu_custom_call.1} parent=1 // pred_check
      _
    $region31: #{tpu_custom_call.1} parent=1 // pred_check_branch
      %110 = sbr.rel (0) target = $region33
    $region32: #{tpu_custom_call.1} parent=1 // pred_region
      %111 = dma.done [#allocation7], 128
    $region33: #{tpu_custom_call.1} parent=1 // pred_fallthru
      _
    %112 = vsyncpa [#allocation3], 1
    %113 = vsyncpa [#allocation4], 1
    %114 = vsyncpa [#allocation7], 1

</llo_original>
